<compile_context>
chip_gen: v7x
topology: tpu7x:2x2x1
jax: 0.10.0
libtpu: 0.0.40
codegen_flags: <defaults>
</compile_context>

<pallas_src>
import numpy as np
import jax
import jax.numpy as jnp
from jax.experimental import pallas as pl
from jax.experimental.pallas import tpu as pltpu


_VMEM_LIMIT_BYTES = 48 * 1024 * 1024  # headroom below v7x's 64 MiB physical VMEM


def _round_up(x, m):
    return ((x + m - 1) // m) * m


def _centroid_kernel(pg_ref, w_ref, c_ref):
    """Leave-one-out centroids, L2-normalized, with w folded into the scale."""
    pg = pg_ref[...]                      # [M, Np, D] f32; pg[j, i] = j-th game of player i
    w = w_ref[0]
    M = pg.shape[0]

    if M > 1:
        tot = jnp.sum(pg, axis=0, keepdims=True)              # [1, Np, D]
        loo = (tot - pg) * jnp.float32(1.0 / (M - 1))          # [M, Np, D]
    else:
        loo = pg

    # torch: centroid / (norm + 1e-8); w folded in so sim = <q, c_scaled> = w * <q, c_hat>.
    norm = jnp.sqrt(jnp.sum(loo * loo, axis=-1, keepdims=True))   # [M, Np, 1]
    scale = w * pl.reciprocal(norm + 1e-8, approx=False)
    c_ref[...] = (loo * scale).astype(c_ref.dtype)


def _make_loss_kernel(n_valid, use_mxu):
    """Per-query-tile loss kernel: out[j, t] = -correct + log(sum_k exp(sim_k))."""

    def kernel(q_ref, c_ref, out_ref):
        M, T, D = q_ref.shape
        Np = c_ref.shape[1]
        i0 = pl.multiple_of(pl.program_id(0) * T, 8)

        q = q_ref[...]                     # [M, T, D]   (f32 or bf16)
        c = c_ref[...]                     # [M, Np, D]  (same dtype, w pre-folded)

        if use_mxu:
            # sim[j, t, k] = <q_{i0+t, j}, w * c_hat_{k, j}>: batch over j, contract D (MXU).
            sim = jax.lax.dot_general(
                q, c,
                dimension_numbers=(((2,), (2,)), ((0,), (0,))),
                preferred_element_type=jnp.float32)            # [M, T, Np]
        else:
            # Small-N path: a [T, Np] matmul uses <2% of an MXU tile; VPU reduce is cheaper.
            sim = jnp.sum(q[:, :, None, :].astype(jnp.float32) *
                          c[:, None, :, :].astype(jnp.float32), axis=-1)

        # Diagonal ("correct") similarity computed directly from the matching centroid
        # block (no iota/mask pass over the full [M, T, Np] tensor).
        c_diag = c_ref[:, pl.ds(i0, T), :]                      # [M, T, D]
        correct = jnp.sum(q.astype(jnp.float32) * c_diag.astype(jnp.float32),
                          axis=-1, keepdims=True)               # [M, T, 1]

        # Stable form: -correct + log(sum exp(sim)) == log(sum exp(sim - correct)).
        d = sim - correct
        if Np != n_valid:  # mask padded centroid columns (static gate)
            col = jax.lax.broadcasted_iota(jnp.int32, (M, T, Np), 2)
            d = jnp.where(col < n_valid, d, -jnp.inf)

        # TODO(synk): for very large N the single EUP slot (exp over M*T*Np elems) becomes
        # the binding unit; confirm with a bundle dump before further micro-optimization.
        out_ref[...] = jnp.log(jnp.sum(jnp.exp(d), axis=-1, keepdims=True))

    return kernel


def ge2e_loss(game_vectors, player_indices, w=10.0, b=5.0, tile_i=512):
    """Host glue (dynamic N/M discovery, per-player gather, padding/tiling) + Pallas kernels."""
    del b  # b is added to both lse and the correct term and cancels exactly in the loss.

    gv = jnp.asarray(game_vectors, dtype=jnp.float32)
    idx = np.asarray(player_indices)

    # TODO(synk): torch.unique()/.item() based N, M discovery is inherently dynamic-shaped;
    # it runs host-side (numpy) here, all dense math runs in the kernels.
    uniq = np.unique(idx)
    N = int(len(uniq))
    counts = [int((idx == p).sum()) for p in range(N)]
    M = int(min(counts))
    D = int(gv.shape[-1])

    # Per-player first-M games (matches the boolean-mask gather in the torch code),
    # laid out [M, N, D] so j is the matmul batch dim (no in-kernel transpose).
    rows = np.stack([np.where(idx == i)[0][:M] for i in range(N)], axis=0)        # [N, M]
    pg_rows = rows.T.reshape(-1)                                                  # pg[j, i] = j-th game of player i
    q_rows = (np.arange(N)[None, :] * M + np.arange(M)[:, None]).reshape(-1)      # q[j, i] = gv[i*M + j]

    player_games = gv[pg_rows].reshape(M, N, D)
    if np.array_equal(pg_rows, q_rows):
        query_games = player_games       # canonical contiguous layout: one HBM buffer, not two
    else:
        query_games = gv[q_rows].reshape(M, N, D)

    # Query-axis tiling: TILE a multiple of 8 (sublane); prefer 256/512 for MXU fill.
    tile = min(int(tile_i), _round_up(N, 8))
    tile = _round_up(tile, 8)
    n_pad = _round_up(N, tile)
    grid = (n_pad // tile,)

    if n_pad != N:
        pad = [(0, 0), (0, n_pad - N), (0, 0)]
        player_games_p = jnp.pad(player_games, pad)
        query_games_p = player_games_p if query_games is player_games else jnp.pad(query_games, pad)
    else:
        player_games_p, query_games_p = player_games, query_games

    # MXU is natively bf16; use bf16 operands when N is big enough for the matmul to
    # matter (w=10 amplifies rounding, so gate on size rather than always-on).
    use_mxu = N >= 64
    mm_dtype = jnp.bfloat16 if N >= 128 else jnp.float32

    w_arr = jnp.array([w], dtype=jnp.float32)

    # Kernel 1: centroids computed once (LOO mean + norm + w fold), emitted in mm_dtype.
    centroids = pl.pallas_call(
        _centroid_kernel,
        out_shape=jax.ShapeDtypeStruct((M, n_pad, D), mm_dtype),
        in_specs=[
            pl.BlockSpec(memory_space=pltpu.MemorySpace.VMEM),
            pl.BlockSpec(memory_space=pltpu.MemorySpace.SMEM),
        ],
        out_specs=pl.BlockSpec(memory_space=pltpu.MemorySpace.VMEM),
        compiler_params=pltpu.CompilerParams(vmem_limit_bytes=_VMEM_LIMIT_BYTES),
    )(player_games_p, w_arr)

    # Kernel 2: gridded over query-player tiles; query blocks streamed (BlockSpec
    # double-buffering), centroids resident; grid axis "parallel" for v7x megacore.
    per_row = pl.pallas_call(
        _make_loss_kernel(N, use_mxu),
        out_shape=jax.ShapeDtypeStruct((M, n_pad, 1), jnp.float32),
        grid_spec=pltpu.PrefetchScalarGridSpec(
            num_scalar_prefetch=0,
            grid=grid,
            in_specs=[
                pl.BlockSpec((M, tile, D), lambda i: (0, i, 0)),     # streamed query block
                pl.BlockSpec((M, n_pad, D), lambda i: (0, 0, 0)),    # resident centroids
            ],
            out_specs=pl.BlockSpec((M, tile, 1), lambda i: (0, i, 0)),
        ),
        compiler_params=pltpu.CompilerParams(
            dimension_semantics=("parallel",),
            vmem_limit_bytes=_VMEM_LIMIT_BYTES),
    )(query_games_p.astype(mm_dtype), centroids)

    # Tiny XLA epilogue: drop padded query rows, sum, average.
    return jnp.sum(per_row[:, :N, 0]) / jnp.float32(N * M)


def ge2e_loss_ref(gv, idx, w=10.0, b=5.0):
    """Literal numpy transcription of the PyTorch forward (for validation)."""
    gv = np.asarray(gv, dtype=np.float32)
    idx = np.asarray(idx)
    uniq = np.unique(idx)
    N = len(uniq)
    counts = [int((idx == p).sum()) for p in range(N)]
    M = min(counts)
    D = gv.shape[-1]
    centroids = np.zeros((N, M, D), dtype=np.float64)
    for i in range(N):
        pg = gv[idx == i][:M].astype(np.float64)
        for j in range(M):
            if len(pg) > 1:
                other = np.concatenate([pg[:j], pg[j + 1:]], axis=0)
                c = other.mean(axis=0)
            else:
                c = pg[0]
            centroids[i, j] = c / (np.linalg.norm(c) + 1e-8)
    sim = np.zeros((N, M, N), dtype=np.float64)
    for i in range(N):
        for j in range(M):
            g = gv[i * M + j].astype(np.float64)
            sims = np.sum(g[None, :] * centroids[:, j], axis=-1)
            sim[i, j] = w * sims + b
    loss = 0.0
    for i in range(N):
        for j in range(M):
            loss += -sim[i, j, i] + np.log(np.exp(sim[i, j]).sum())
    return loss / (N * M)


if __name__ == "__main__":
    key = jax.random.PRNGKey(0)
    k1, k2 = jax.random.split(key)

    # Test 1: small shapes (4 players x 4 games, D=32) -> f32 / VPU path, single tile.
    N, M, D = 4, 4, 32
    game_vectors = jax.random.normal(k1, (N * M, D), dtype=jnp.float32)
    player_indices = jnp.repeat(jnp.arange(N, dtype=jnp.int32), M)
    loss = jax.block_until_ready(ge2e_loss(game_vectors, player_indices, w=10.0, b=5.0))
    ref = ge2e_loss_ref(np.asarray(game_vectors), np.asarray(player_indices), w=10.0, b=5.0)
    assert np.allclose(float(loss), float(ref), rtol=1e-3, atol=1e-2), (float(loss), float(ref))

    # Test 2: larger (160 players x 4 games, D=64), tile_i=64 -> gridded, padded,
    # bf16 MXU path (looser tolerance: bf16 rounding amplified by w=10).
    N2, M2, D2 = 160, 4, 64
    gv2 = jax.random.normal(k2, (N2 * M2, D2), dtype=jnp.float32)
    idx2 = jnp.repeat(jnp.arange(N2, dtype=jnp.int32), M2)
    loss2 = jax.block_until_ready(ge2e_loss(gv2, idx2, w=10.0, b=5.0, tile_i=64))
    ref2 = ge2e_loss_ref(np.asarray(gv2), np.asarray(idx2), w=10.0, b=5.0)
    assert np.allclose(float(loss2), float(ref2), rtol=2e-2, atol=2e-2), (float(loss2), float(ref2))

    print("KERNEL_OK")
</pallas_src>

<mosaic_0001>
module attributes {stable_mosaic.version = 11 : i64} {
  func.func @_centroid_kernel(%arg0: memref<4x8x32xf32, #tpu.memory_space<vmem>>, %arg1: memref<1xf32, #tpu.memory_space<smem>>, %arg2: memref<4x8x32xf32, #tpu.memory_space<vmem>>) attributes {dimension_semantics = [], scalar_prefetch = 0 : i64, scratch_operands = 0 : i64, tpu.core_type = #tpu.core_type<tc>} {
    %c0 = arith.constant 0 : index
    %c0_0 = arith.constant 0 : index
    %c0_1 = arith.constant 0 : index
    %0 = vector.load %arg0[%c0, %c0_0, %c0_1] : memref<4x8x32xf32, #tpu.memory_space<vmem>>, vector<4x8x32xf32>
    %c0_2 = arith.constant 0 : index
    %1 = memref.load %arg1[%c0_2] : memref<1xf32, #tpu.memory_space<smem>>
    %cst = arith.constant dense<0.000000e+00> : vector<8x32xf32>
    %2 = vector.multi_reduction <add>, %0, %cst [0] : vector<4x8x32xf32> to vector<8x32xf32>
    %3 = vector.shape_cast %2 : vector<8x32xf32> to vector<1x8x32xf32>
    %4 = vector.broadcast %3 : vector<1x8x32xf32> to vector<4x8x32xf32>
    %5 = arith.subf %4, %0 : vector<4x8x32xf32>
    %cst_3 = arith.constant 0.333333343 : f32
    %6 = vector.broadcast %cst_3 : f32 to vector<4x8x32xf32>
    %7 = arith.mulf %5, %6 : vector<4x8x32xf32>
    %8 = arith.mulf %7, %7 : vector<4x8x32xf32>
    %cst_4 = arith.constant dense<0.000000e+00> : vector<4x8xf32>
    %9 = vector.multi_reduction <add>, %8, %cst_4 [2] : vector<4x8x32xf32> to vector<4x8xf32>
    %10 = vector.shape_cast %9 : vector<4x8xf32> to vector<4x8x1xf32>
    %11 = math.sqrt %10 : vector<4x8x1xf32>
    %cst_5 = arith.constant 9.99999993E-9 : f32
    %12 = vector.broadcast %cst_5 : f32 to vector<4x8x1xf32>
    %13 = arith.addf %11, %12 : vector<4x8x1xf32>
    %14 = tpu.reciprocal %13 : vector<4x8x1xf32> -> vector<4x8x1xf32>
    %15 = vector.broadcast %1 : f32 to vector<4x8x1xf32>
    %16 = arith.mulf %15, %14 : vector<4x8x1xf32>
    %17 = vector.broadcast %16 : vector<4x8x1xf32> to vector<4x8x32xf32>
    %18 = arith.mulf %7, %17 : vector<4x8x32xf32>
    %c0_6 = arith.constant 0 : index
    %c0_7 = arith.constant 0 : index
    %c0_8 = arith.constant 0 : index
    %19 = vector.load %arg2[%c0_6, %c0_7, %c0_8] : memref<4x8x32xf32, #tpu.memory_space<vmem>>, vector<4x8x32xf32>
    tpu.vector_store %arg2[%c0_6, %c0_7, %c0_8], %18 {strides = array<i32>} : memref<4x8x32xf32, #tpu.memory_space<vmem>>, vector<4x8x32xf32>,
    return
  }
}

</mosaic_0001>

<llo_original>
// kernel: tpu_custom_call.1
$region0: #{tpu_custom_call.1}
  #allocation0 [shape = 'u32[]', space=smem, size = 0x4, offset = 0x4, fixed_abs, tag = 'smem constant byte address 0x4 - core index']
  #allocation1 [shape = 'u32[144,128]{1,0:T(1,128)}', space=vmem, size = 0x12000, scoped, tag = 'internal scratch']
  #allocation2 [shape = 'f32[1]{0:T(128)S(6)}', space=smem, size = 0x200, scoped, tag = 'scoped memory for tpu_custom_call.1']
  %s0 = inlined_call_operand.hbm [shape: f32[4,8,32], index: 0, kind: input, shape index: {}]
  %s1 = inlined_call_operand.<no memory space> [shape: f32[1], index: 1, kind: input, shape index: {}]
  %s2 = inlined_call_operand.hbm [shape: f32[4,8,32], index: 2, kind: output, shape index: {}]
  %s3 = sld [smem:[#allocation0]]
  $region22: #{tpu_custom_call.1} parent=0
    _
  %s5 = ssub.s32 1, %s3
  %s6 = scalar_select 0, %s5, %s3
  %7 = sst [smem:[#allocation2]] %s1
  $region1: #{tpu_custom_call.1} parent=0
    #allocation3 [shape = 'u8[16384]{0}', space=vmem, size = 0x4000, scoped, tag = 'input window, operand 0, single buffered']
    #allocation4 [shape = 's32[1]{0}', space=sflag, size = 0x4, scoped, tag = 'scoped memory for tpu_custom_call.1']
    #allocation5 [shape = 's32[1]{0}', space=sflag, size = 0x4, scoped, tag = 'scoped memory for tpu_custom_call.1']
    #allocation6 [shape = 'u8[16384]{0}', space=vmem, size = 0x4000, scoped, tag = 'output window, operand 0, single buffered']
    %8 = vsyncpa [#allocation4], 0
    %9 = vsyncpa [#allocation5], 0
    // Predicated region
    $region2: #{tpu_custom_call.1} parent=1 // pred_check
      _
    $region3: #{tpu_custom_call.1} parent=1 // pred_check_branch
      %11 = sbr.rel (0) target = $region5
    $region4: #{tpu_custom_call.1} parent=1 // pred_region
      %s13 = ssub.s32 512, 512
      %14 = vsyncadd [#allocation4], %s13
      %s15 = sshll.u32 [#allocation3], 4
      %s16 = int_to_ptr.vmem [resolvable:$true] %s15
      %21 = dma.hbm_to_vmem [thread:$0]  %s0, 512, %s16, [#allocation4], 128, 128, 8
    $region5: #{tpu_custom_call.1} parent=1 // pred_fallthru
      _
    // Predicated region
    $region6: #{tpu_custom_call.1} parent=1 // pred_check
      _
    $region7: #{tpu_custom_call.1} parent=1 // pred_check_branch
      %23 = sbr.rel (0) target = $region9
    $region8: #{tpu_custom_call.1} parent=1 // pred_region
      _
    $region9: #{tpu_custom_call.1} parent=1 // pred_fallthru
      _
    // Predicated region
    $region10: #{tpu_custom_call.1} parent=1 // pred_check
      _
    $region11: #{tpu_custom_call.1} parent=1 // pred_check_branch
      %25 = sbr.rel (0) target = $region13
    $region12: #{tpu_custom_call.1} parent=1 // pred_region
      %26 = dma.done [#allocation4], 512
    $region13: #{tpu_custom_call.1} parent=1 // pred_fallthru
      _
    %v27 = vld [vmem:[#allocation3] sm:$0xff]
    %v28 = vld [vmem:[#allocation3 + $0x8] sm:$0xff]
    %v29 = vld [vmem:[#allocation3 + $0x10] sm:$0xff]
    %v30 = vld [vmem:[#allocation3 + $0x18] sm:$0xff]
    %s31 = sld [smem:[#allocation2]]
    %vm32 = vcmask 261120
    %v33 = vsel %vm32, %v27, 0.0
    %v34 = vsel %vm32, %v28, 0.0
    %v35 = vadd.f32 %v33, %v34
    %v36 = vsel %vm32, %v29, 0.0
    %v37 = vadd.f32 %v35, %v36
    %v38 = vsel %vm32, %v30, 0.0
    %v39 = vadd.f32 %v37, %v38
    %v40 = vsub.f32 %v39, %v27
    %v41 = vsub.f32 %v39, %v28
    %v42 = vsub.f32 %v39, %v29
    %v43 = vsub.f32 %v39, %v30
    %v44 = vmul.f32 %v40, 0.33333334
    %v45 = vmul.f32 %v41, 0.33333334
    %v46 = vmul.f32 %v42, 0.33333334
    %v47 = vmul.f32 %v43, 0.33333334
    %v48 = vmul.f32 %v44, %v44
    %v49 = vmul.f32 %v45, %v45
    %v50 = vmul.f32 %v46, %v46
    %v51 = vmul.f32 %v47, %v47
    %v52 = vsel %vm32, %v48, 0.0
    %53 = vadd.xlane.f32.xlu0 %v52
    %v54 = vpop.xlane.xlu0 %53
    %v55 = vsel %vm32, %v49, 0.0
    %56 = vadd.xlane.f32.xlu0 %v55
    %v57 = vpop.xlane.xlu0 %56
    %v58 = vsel %vm32, %v50, 0.0
    %59 = vadd.xlane.f32.xlu0 %v58
    %v60 = vpop.xlane.xlu0 %59
    %v61 = vsel %vm32, %v51, 0.0
    %62 = vadd.xlane.f32.xlu0 %v61
    %v63 = vpop.xlane.xlu0 %62
    %v64 = vrsqrt.pop %v54
    %v65 = vmul.f32 %v54, %v64
    %vm66 = vcmp.eq.f32.partialorder %v54, inf
    %v67 = vsel %vm66, %v54, %v65
    %vm68 = vcmp.eq.f32.partialorder %v54, 0.0
    %v69 = vand.u32 %v54, 2147483648
    %v70 = vsel %vm68, %v69, %v67
    %v71 = vrsqrt.pop %v57
    %v72 = vmul.f32 %v57, %v71
    %vm73 = vcmp.eq.f32.partialorder %v57, inf
    %v74 = vsel %vm73, %v57, %v72
    %vm75 = vcmp.eq.f32.partialorder %v57, 0.0
    %v76 = vand.u32 %v57, 2147483648
    %v77 = vsel %vm75, %v76, %v74
    %v78 = vrsqrt.pop %v60
    %v79 = vmul.f32 %v60, %v78
    %vm80 = vcmp.eq.f32.partialorder %v60, inf
    %v81 = vsel %vm80, %v60, %v79
    %vm82 = vcmp.eq.f32.partialorder %v60, 0.0
    %v83 = vand.u32 %v60, 2147483648
    %v84 = vsel %vm82, %v83, %v81
    %v85 = vrsqrt.pop %v63
    %v86 = vmul.f32 %v63, %v85
    %vm87 = vcmp.eq.f32.partialorder %v63, inf
    %v88 = vsel %vm87, %v63, %v86
    %vm89 = vcmp.eq.f32.partialorder %v63, 0.0
    %v90 = vand.u32 %v63, 2147483648
    %v91 = vsel %vm89, %v90, %v88
    %v92 = vadd.f32 %v70, 1e-08
    %v93 = vadd.f32 %v77, 1e-08
    %v94 = vadd.f32 %v84, 1e-08
    %v95 = vadd.f32 %v91, 1e-08
    %v96 = vrcp.pop %v92
    %v97 = vrcp.pop %v93
    %v98 = vrcp.pop %v94
    %v99 = vrcp.pop %v95
    %v100 = vstv %s31
    %v101 = vmul.f32 %v100, %v96
    %v102 = vmul.f32 %v100, %v97
    %v103 = vmul.f32 %v100, %v98
    %v104 = vmul.f32 %v100, %v99
    %v105 = vmul.f32 %v44, %v101
    %v106 = vmul.f32 %v45, %v102
    %v107 = vmul.f32 %v46, %v103
    %v108 = vmul.f32 %v47, %v104
    %109 = vst.msk [vmem:[#allocation6] sm:$0xff] %vm32, %v105
    %110 = vst.msk [vmem:[#allocation6 + $0x8] sm:$0xff] %vm32, %v106
    %111 = vst.msk [vmem:[#allocation6 + $0x10] sm:$0xff] %vm32, %v107
    %112 = vst.msk [vmem:[#allocation6 + $0x18] sm:$0xff] %vm32, %v108
    // Predicated region
    $region14: #{tpu_custom_call.1} parent=1 // pred_check
      _
    $region15: #{tpu_custom_call.1} parent=1 // pred_check_branch
      %114 = sbr.rel (0) target = $region17
    $region16: #{tpu_custom_call.1} parent=1 // pred_region
      %s116 = ssub.s32 512, 512
      %117 = vsyncadd [#allocation5], %s116
      %s118 = sshll.u32 [#allocation6], 4
      %s119 = int_to_ptr.vmem [resolvable:$true] %s118
      %124 = dma.vmem_to_hbm [thread:$0]  %s119, 512, %s2, [#allocation5], 128, 128, 8
    $region17: #{tpu_custom_call.1} parent=1 // pred_fallthru
      _
    // Predicated region
    $region18: #{tpu_custom_call.1} parent=1 // pred_check
      _
    $region19: #{tpu_custom_call.1} parent=1 // pred_check_branch
      %126 = sbr.rel (0) target = $region21
    $region20: #{tpu_custom_call.1} parent=1 // pred_region
      %127 = dma.done [#allocation5], 512
    $region21: #{tpu_custom_call.1} parent=1 // pred_fallthru
      _
    %128 = vsyncpa [#allocation4], 1
    %129 = vsyncpa [#allocation5], 1

</llo_original>
